<compile_context>
chip_gen: v7x
topology: tpu7x:2x2x1
jax: 0.10.0
libtpu: 0.0.40
codegen_flags: <defaults>
</compile_context>

<pallas_src>
import functools

import jax
import jax.numpy as jnp
from jax.experimental import pallas as pl
from jax.experimental.pallas import tpu as pltpu

LANE = 128    # TPU lane width
MAX_TB = 1024  # batch-tile cap (VMEM footprint is tiny far beyond this)


def _round_up(n, m):
    return ((n + m - 1) // m) * m


def _num_tensorcores():
    # v7x has 2 TensorCores per chip; v5e/v6e have 1.
    try:
        kind = jax.devices()[0].device_kind.lower()
        if "v7" in kind:
            return 2
    except Exception:
        pass
    return 1


N_CORES = _num_tensorcores()


def mlp_kernel(x_ref, w0_ref, b0_ref, w1_ref, b1_ref, wo_ref, bo_ref, o_ref):
    # input_layers: Linear -> Dropout(0.0)=identity -> ReLU
    h = jnp.dot(x_ref[...], w0_ref[...], preferred_element_type=jnp.float32)
    h = jnp.maximum(h + b0_ref[...], 0.0)
    # hidden_layers (num_layers-1 = 1 block): Linear -> Dropout(0.0) -> ReLU
    h = jnp.dot(h.astype(w1_ref.dtype), w1_ref[...],
                preferred_element_type=jnp.float32)
    h = jnp.maximum(h + b1_ref[...], 0.0)
    # output_layer: Linear (no activation)
    out = jnp.dot(h.astype(wo_ref.dtype), wo_ref[...],
                  preferred_element_type=jnp.float32) + bo_ref[...]
    o_ref[...] = out.astype(o_ref.dtype)
    # TODO(synk): dropout with rate>0 would need pltpu.prng_random_bits masking;
    # dropout_rate=0.0 here so it is an exact identity.


def prepare_params(params):
    """Pad + cast parameters ONCE (hoisted out of the per-call path).

    Weights stored (in, out); hidden/class dims zero-padded to lane width.
    The input feature dim is left unpadded (full-extent K on the matmul).
    """
    w0, b0, w1, b1, wo, bo = params
    H = w0.shape[1]
    C = wo.shape[1]
    H_p = _round_up(H, LANE)
    C_p = _round_up(C, LANE)
    bf16 = jnp.bfloat16
    w0_p = jnp.pad(w0, ((0, 0), (0, H_p - H))).astype(bf16)
    b0_p = jnp.pad(b0, ((0, 0), (0, H_p - H))).astype(jnp.float32)
    w1_p = jnp.pad(w1, ((0, H_p - H), (0, H_p - H))).astype(bf16)
    b1_p = jnp.pad(b1, ((0, 0), (0, H_p - H))).astype(jnp.float32)
    wo_p = jnp.pad(wo, ((0, H_p - H), (0, C_p - C))).astype(bf16)
    bo_p = jnp.pad(bo, ((0, 0), (0, C_p - C))).astype(jnp.float32)
    return (w0_p, b0_p, w1_p, b1_p, wo_p, bo_p)


@functools.partial(jax.jit, static_argnames=("num_classes",))
def neural_net_forward(x, padded_params, *, num_classes):
    """x: (B, input_feat_dim) f32.  padded_params: output of prepare_params()."""
    w0_p, b0_p, w1_p, b1_p, wo_p, bo_p = padded_params
    B, Fin = x.shape
    H_p = w0_p.shape[1]
    C_p = wo_p.shape[1]

    # Batch tile: single-TC chips (v5e/v6e) -> one big tile (no grid-step
    # overhead, fills v6e's 256x256 MXU); v7x -> at least 2 tiles so the
    # "parallel" axis shards across both TensorCores.
    B8 = _round_up(B, 8)
    if N_CORES > 1:
        tb = min(_round_up(pl.cdiv(B8, N_CORES), 8), MAX_TB)
    else:
        tb = min(B8, MAX_TB)
    B_p = _round_up(B, tb)
    n_tiles = B_p // tb

    # Only the batch dim is padded; feature dim stays at its true (full-extent)
    # size, which is legal for the last block dim.
    x_p = jnp.pad(x, ((0, B_p - B), (0, 0))).astype(jnp.bfloat16)

    out = pl.pallas_call(
        mlp_kernel,
        out_shape=jax.ShapeDtypeStruct((B_p, C_p), jnp.float32),
        grid=(n_tiles,),
        in_specs=[
            # activations: tiled along batch
            pl.BlockSpec((tb, Fin), lambda i: (i, 0)),
            # weights / biases: constant block index -> VMEM-resident across steps
            pl.BlockSpec((Fin, H_p), lambda i: (0, 0)),
            pl.BlockSpec((1, H_p), lambda i: (0, 0)),
            pl.BlockSpec((H_p, H_p), lambda i: (0, 0)),
            pl.BlockSpec((1, H_p), lambda i: (0, 0)),
            pl.BlockSpec((H_p, C_p), lambda i: (0, 0)),
            pl.BlockSpec((1, C_p), lambda i: (0, 0)),
        ],
        out_specs=pl.BlockSpec((tb, C_p), lambda i: (i, 0)),
        compiler_params=pltpu.CompilerParams(
            dimension_semantics=("parallel",),
        ),
    )(x_p, w0_p, b0_p, w1_p, b1_p, wo_p, bo_p)

    return out[:B, :num_classes]


def init_linear(key, fan_in, fan_out):
    # PyTorch nn.Linear default init: U(-1/sqrt(fan_in), 1/sqrt(fan_in))
    kw, kb = jax.random.split(key)
    bound = 1.0 / jnp.sqrt(jnp.float32(fan_in))
    # stored as (in, out) so kernel computes x @ W + b
    w = jax.random.uniform(kw, (fan_in, fan_out), jnp.float32, -bound, bound)
    b = jax.random.uniform(kb, (1, fan_out), jnp.float32, -bound, bound)
    return w, b


def ref_forward_bf16(x, params):
    # Pure-JAX reference emulating the kernel's bf16-input / f32-accumulate math.
    w0, b0, w1, b1, wo, bo = params
    bf = jnp.bfloat16
    h = jnp.dot(x.astype(bf), w0.astype(bf), preferred_element_type=jnp.float32)
    h = jnp.maximum(h + b0, 0.0)
    h = jnp.dot(h.astype(bf), w1.astype(bf), preferred_element_type=jnp.float32)
    h = jnp.maximum(h + b1, 0.0)
    return jnp.dot(h.astype(bf), wo.astype(bf),
                   preferred_element_type=jnp.float32) + bo


def ref_forward_f32(x, params):
    w0, b0, w1, b1, wo, bo = params
    h = jnp.maximum(x @ w0 + b0, 0.0)
    h = jnp.maximum(h @ w1 + b1, 0.0)
    return h @ wo + bo


if __name__ == "__main__":
    # Shapes consistent with the module's forward; batch=256 gives one 256-row
    # tile on single-TC chips and two 128-row tiles on dual-TC v7x.
    batch = 256
    input_feat_dim = 64
    hidden_size = 32
    num_classes = 10

    key = jax.random.PRNGKey(0)
    k_x, k0, k1, ko = jax.random.split(key, 4)

    x = jax.random.normal(k_x, (batch, input_feat_dim), jnp.float32)

    w0, b0 = init_linear(k0, input_feat_dim, hidden_size)   # input_layers Linear
    w1, b1 = init_linear(k1, hidden_size, hidden_size)      # hidden_layers Linear
    wo, bo = init_linear(ko, hidden_size, num_classes)      # output_layer Linear
    params = (w0, b0, w1, b1, wo, bo)

    # One-time parameter preparation (padding/casting hoisted out of the call).
    padded_params = jax.block_until_ready(prepare_params(params))

    out = neural_net_forward(x, padded_params, num_classes=num_classes)
    out = jax.block_until_ready(out)
    assert out.shape == (batch, num_classes)

    # Tight check vs. a bf16-compute JAX reference (same math as the kernel).
    ref_bf = ref_forward_bf16(x, params)
    assert jnp.allclose(out, ref_bf, atol=1e-3, rtol=1e-3)

    # Loose sanity check vs. the pure-f32 PyTorch-equivalent forward.
    ref_f32 = ref_forward_f32(x, params)
    assert jnp.allclose(out, ref_f32, atol=1e-1, rtol=1e-1)

    print("KERNEL_OK")
</pallas_src>

<mosaic_0001>
module attributes {stable_mosaic.version = 11 : i64} {
  func.func @mlp_kernel(%arg0: i32, %arg1: memref<256x64xbf16, #tpu.memory_space<vmem>>, %arg2: memref<64x128xbf16, #tpu.memory_space<vmem>>, %arg3: memref<1x128xf32, #tpu.memory_space<vmem>>, %arg4: memref<128x128xbf16, #tpu.memory_space<vmem>>, %arg5: memref<1x128xf32, #tpu.memory_space<vmem>>, %arg6: memref<128x128xbf16, #tpu.memory_space<vmem>>, %arg7: memref<1x128xf32, #tpu.memory_space<vmem>>, %arg8: memref<256x128xf32, #tpu.memory_space<vmem>>) attributes {dimension_semantics = [#tpu.dimension_semantics<parallel>], iteration_bounds = array<i64: 1>, scalar_prefetch = 0 : i64, scratch_operands = 0 : i64, tpu.core_type = #tpu.core_type<tc>, window_params = [{transform_indices = @transform_0, window_bounds = array<i64: 256, 64>}, {pipeline_mode = #tpu.pipeline_mode<synchronous>, transform_indices = @transform_1, window_bounds = array<i64: 64, 128>}, {pipeline_mode = #tpu.pipeline_mode<synchronous>, transform_indices = @transform_2, window_bounds = array<i64: 1, 128>}, {pipeline_mode = #tpu.pipeline_mode<synchronous>, transform_indices = @transform_3, window_bounds = array<i64: 128, 128>}, {pipeline_mode = #tpu.pipeline_mode<synchronous>, transform_indices = @transform_4, window_bounds = array<i64: 1, 128>}, {pipeline_mode = #tpu.pipeline_mode<synchronous>, transform_indices = @transform_5, window_bounds = array<i64: 128, 128>}, {pipeline_mode = #tpu.pipeline_mode<synchronous>, transform_indices = @transform_6, window_bounds = array<i64: 1, 128>}, {transform_indices = @transform_7, window_bounds = array<i64: 256, 128>}]} {
    %c0 = arith.constant 0 : index
    %c0_0 = arith.constant 0 : index
    %0 = vector.load %arg1[%c0, %c0_0] : memref<256x64xbf16, #tpu.memory_space<vmem>>, vector<256x64xbf16>
    %c0_1 = arith.constant 0 : index
    %c0_2 = arith.constant 0 : index
    %1 = vector.load %arg2[%c0_1, %c0_2] : memref<64x128xbf16, #tpu.memory_space<vmem>>, vector<64x128xbf16>
    %cst = arith.constant dense<0.000000e+00> : vector<256x128xf32>
    %2 = tpu.matmul %0, %1, %cst {dimension_numbers = #tpu.dot_dimension_numbers<[1], [0], [0], [1], [0, 0, 1, 1], [], []>} : vector<256x64xbf16>, vector<64x128xbf16>, vector<256x128xf32> -> vector<256x128xf32>
    %c0_3 = arith.constant 0 : index
    %c0_4 = arith.constant 0 : index
    %3 = vector.load %arg3[%c0_3, %c0_4] : memref<1x128xf32, #tpu.memory_space<vmem>>, vector<1x128xf32>
    %4 = vector.broadcast %3 : vector<1x128xf32> to vector<256x128xf32>
    %5 = arith.addf %2, %4 : vector<256x128xf32>
    %cst_5 = arith.constant 0.000000e+00 : f32
    %6 = vector.broadcast %cst_5 : f32 to vector<256x128xf32>
    %7 = arith.maximumf %5, %6 : vector<256x128xf32>
    %8 = arith.truncf %7 : vector<256x128xf32> to vector<256x128xbf16>
    %c0_6 = arith.constant 0 : index
    %c0_7 = arith.constant 0 : index
    %9 = vector.load %arg4[%c0_6, %c0_7] : memref<128x128xbf16, #tpu.memory_space<vmem>>, vector<128x128xbf16>
    %cst_8 = arith.constant dense<0.000000e+00> : vector<256x128xf32>
    %10 = tpu.matmul %8, %9, %cst_8 {dimension_numbers = #tpu.dot_dimension_numbers<[1], [0], [0], [1], [0, 0, 1, 1], [], []>} : vector<256x128xbf16>, vector<128x128xbf16>, vector<256x128xf32> -> vector<256x128xf32>
    %c0_9 = arith.constant 0 : index
    %c0_10 = arith.constant 0 : index
    %11 = vector.load %arg5[%c0_9, %c0_10] : memref<1x128xf32, #tpu.memory_space<vmem>>, vector<1x128xf32>
    %12 = vector.broadcast %11 : vector<1x128xf32> to vector<256x128xf32>
    %13 = arith.addf %10, %12 : vector<256x128xf32>
    %cst_11 = arith.constant 0.000000e+00 : f32
    %14 = vector.broadcast %cst_11 : f32 to vector<256x128xf32>
    %15 = arith.maximumf %13, %14 : vector<256x128xf32>
    %16 = arith.truncf %15 : vector<256x128xf32> to vector<256x128xbf16>
    %c0_12 = arith.constant 0 : index
    %c0_13 = arith.constant 0 : index
    %17 = vector.load %arg6[%c0_12, %c0_13] : memref<128x128xbf16, #tpu.memory_space<vmem>>, vector<128x128xbf16>
    %cst_14 = arith.constant dense<0.000000e+00> : vector<256x128xf32>
    %18 = tpu.matmul %16, %17, %cst_14 {dimension_numbers = #tpu.dot_dimension_numbers<[1], [0], [0], [1], [0, 0, 1, 1], [], []>} : vector<256x128xbf16>, vector<128x128xbf16>, vector<256x128xf32> -> vector<256x128xf32>
    %c0_15 = arith.constant 0 : index
    %c0_16 = arith.constant 0 : index
    %19 = vector.load %arg7[%c0_15, %c0_16] : memref<1x128xf32, #tpu.memory_space<vmem>>, vector<1x128xf32>
    %20 = vector.broadcast %19 : vector<1x128xf32> to vector<256x128xf32>
    %21 = arith.addf %18, %20 : vector<256x128xf32>
    %c0_17 = arith.constant 0 : index
    %c0_18 = arith.constant 0 : index
    %22 = vector.load %arg8[%c0_17, %c0_18] : memref<256x128xf32, #tpu.memory_space<vmem>>, vector<256x128xf32>
    tpu.vector_store %arg8[%c0_17, %c0_18], %21 {strides = array<i32>} : memref<256x128xf32, #tpu.memory_space<vmem>>, vector<256x128xf32>,
    return
  }
  func.func @transform_0(%arg0: i32) -> (i32, i32) {
    %c0_i32 = arith.constant 0 : i32
    %c0_i32_0 = arith.constant 0 : i32
    return %arg0, %c0_i32 : i32, i32
  }
  func.func @transform_1(%arg0: i32) -> (i32, i32) {
    %c0_i32 = arith.constant 0 : i32
    %c0_i32_0 = arith.constant 0 : i32
    %c0_i32_1 = arith.constant 0 : i32
    return %c0_i32, %c0_i32_0 : i32, i32
  }
  func.func @transform_2(%arg0: i32) -> (i32, i32) {
    %c0_i32 = arith.constant 0 : i32
    %c0_i32_0 = arith.constant 0 : i32
    %c0_i32_1 = arith.constant 0 : i32
    return %c0_i32, %c0_i32_0 : i32, i32
  }
  func.func @transform_3(%arg0: i32) -> (i32, i32) {
    %c0_i32 = arith.constant 0 : i32
    %c0_i32_0 = arith.constant 0 : i32
    %c0_i32_1 = arith.constant 0 : i32
    return %c0_i32, %c0_i32_0 : i32, i32
  }
  func.func @transform_4(%arg0: i32) -> (i32, i32) {
    %c0_i32 = arith.constant 0 : i32
    %c0_i32_0 = arith.constant 0 : i32
    %c0_i32_1 = arith.constant 0 : i32
    return %c0_i32, %c0_i32_0 : i32, i32
  }
  func.func @transform_5(%arg0: i32) -> (i32, i32) {
    %c0_i32 = arith.constant 0 : i32
    %c0_i32_0 = arith.constant 0 : i32
    %c0_i32_1 = arith.constant 0 : i32
    return %c0_i32, %c0_i32_0 : i32, i32
  }
  func.func @transform_6(%arg0: i32) -> (i32, i32) {
    %c0_i32 = arith.constant 0 : i32
    %c0_i32_0 = arith.constant 0 : i32
    %c0_i32_1 = arith.constant 0 : i32
    return %c0_i32, %c0_i32_0 : i32, i32
  }
  func.func @transform_7(%arg0: i32) -> (i32, i32) {
    %c0_i32 = arith.constant 0 : i32
    %c0_i32_0 = arith.constant 0 : i32
    return %arg0, %c0_i32 : i32, i32
  }
}

</mosaic_0001>

<llo_original>
// kernel: neural_net_forward.1
$region0: #{neural_net_forward.1}
  #allocation0 [shape = 'u32[]', space=smem, size = 0x4, offset = 0x4, fixed_abs, tag = 'smem constant byte address 0x4 - core index']
  #allocation1 [shape = 'u32[144,128]{1,0:T(1,128)}', space=vmem, size = 0x12000, scoped, tag = 'internal scratch']
  %s0 = inlined_call_operand.vmem [shape: bf16[256,64], index: 0, kind: input, shape index: {}]
  %s1 = inlined_call_operand.vmem [shape: bf16[64,128], index: 1, kind: input, shape index: {}]
  %s2 = inlined_call_operand.vmem [shape: f32[1,128], index: 2, kind: input, shape index: {}]
  %s3 = inlined_call_operand.vmem [shape: bf16[128,128], index: 3, kind: input, shape index: {}]
  %s4 = inlined_call_operand.vmem [shape: f32[1,128], index: 4, kind: input, shape index: {}]
  %s5 = inlined_call_operand.vmem [shape: bf16[128,128], index: 5, kind: input, shape index: {}]
  %s6 = inlined_call_operand.vmem [shape: f32[1,128], index: 6, kind: input, shape index: {}]
  %s7 = inlined_call_operand.vmem [shape: f32[256,128], index: 7, kind: output, shape index: {}]
  %s8 = sld [smem:[#allocation0]]
  $region38: #{neural_net_forward.1} parent=0
    _
  %s10 = ssub.s32 1, %s8
  %s11 = scalar_select 0, %s10, %s8
  // Predicated region
  $region2: #{neural_net_forward.1} parent=0 // pred_check
    _
  $region3: #{neural_net_forward.1} parent=0 // pred_check_branch
    %13 = sbr.rel (0) target = $region5
  $region4: #{neural_net_forward.1} parent=0 // pred_region
    _
  $region5: #{neural_net_forward.1} parent=0 // pred_fallthru
    _
  // Predicated region
  $region6: #{neural_net_forward.1} parent=0 // pred_check
    _
  $region7: #{neural_net_forward.1} parent=0 // pred_check_branch
    %15 = sbr.rel (0) target = $region9
  $region8: #{neural_net_forward.1} parent=0 // pred_region
    _
  $region9: #{neural_net_forward.1} parent=0 // pred_fallthru
    _
  // Predicated region
  $region10: #{neural_net_forward.1} parent=0 // pred_check
    _
  $region11: #{neural_net_forward.1} parent=0 // pred_check_branch
    %17 = sbr.rel (0) target = $region13
  $region12: #{neural_net_forward.1} parent=0 // pred_region
    _
  $region13: #{neural_net_forward.1} parent=0 // pred_fallthru
    _
  // Predicated region
  $region14: #{neural_net_forward.1} parent=0 // pred_check
    _
  $region15: #{neural_net_forward.1} parent=0 // pred_check_branch
    %19 = sbr.rel (0) target = $region17
  $region16: #{neural_net_forward.1} parent=0 // pred_region
    _
  $region17: #{neural_net_forward.1} parent=0 // pred_fallthru
    _
  // Predicated region
  $region18: #{neural_net_forward.1} parent=0 // pred_check
    _
  $region19: #{neural_net_forward.1} parent=0 // pred_check_branch
    %21 = sbr.rel (0) target = $region21
  $region20: #{neural_net_forward.1} parent=0 // pred_region
    _
  $region21: #{neural_net_forward.1} parent=0 // pred_fallthru
    _
  // Predicated region
  $region22: #{neural_net_forward.1} parent=0 // pred_check
    _
  $region23: #{neural_net_forward.1} parent=0 // pred_check_branch
    %23 = sbr.rel (0) target = $region25
  $region24: #{neural_net_forward.1} parent=0 // pred_region
    _
  $region25: #{neural_net_forward.1} parent=0 // pred_fallthru
    _
  // Predicated region
  $region26: #{neural_net_forward.1} parent=0 // pred_check
    _
  $region27: #{neural_net_forward.1} parent=0 // pred_check_branch
    %25 = sbr.rel (0) target = $region29
  $region28: #{neural_net_forward.1} parent=0 // pred_region
    _
  $region29: #{neural_net_forward.1} parent=0 // pred_fallthru
    _
  %v27 = vld [vmem:[%s0] sm:$0xf]
  %v28 = vld [vmem:[%s0 + $0x4] sm:$0xf]
  %v29 = vld [vmem:[%s0 + $0x8] sm:$0xf]
  %v30 = vld [vmem:[%s0 + $0xc] sm:$0xf]
  %v31 = vld [vmem:[%s0 + $0x10] sm:$0xf]
  %v32 = vld [vmem:[%s0 + $0x14] sm:$0xf]
  %v33 = vld [vmem:[%s0 + $0x18] sm:$0xf]
  %v34 = vld [vmem:[%s0 + $0x1c] sm:$0xf]
  %v35 = vld [vmem:[%s0 + $0x20] sm:$0xf]
  %v36 = vld [vmem:[%s0 + $0x24] sm:$0xf]
  %v37 = vld [vmem:[%s0 + $0x28] sm:$0xf]
  %v38 = vld [vmem:[%s0 + $0x2c] sm:$0xf]
  %v39 = vld [vmem:[%s0 + $0x30] sm:$0xf]
  %v40 = vld [vmem:[%s0 + $0x34] sm:$0xf]
  %v41 = vld [vmem:[%s0 + $0x38] sm:$0xf]
  %v42 = vld [vmem:[%s0 + $0x3c] sm:$0xf]
  %v43 = vld [vmem:[%s0 + $0x40] sm:$0xf]
  %v44 = vld [vmem:[%s0 + $0x44] sm:$0xf]
  %v45 = vld [vmem:[%s0 + $0x48] sm:$0xf]
  %v46 = vld [vmem:[%s0 + $0x4c] sm:$0xf]
  %v47 = vld [vmem:[%s0 + $0x50] sm:$0xf]
  %v48 = vld [vmem:[%s0 + $0x54] sm:$0xf]
  %v49 = vld [vmem:[%s0 + $0x58] sm:$0xf]
  %v50 = vld [vmem:[%s0 + $0x5c] sm:$0xf]
  %v51 = vld [vmem:[%s0 + $0x60] sm:$0xf]
  %v52 = vld [vmem:[%s0 + $0x64] sm:$0xf]
  %v53 = vld [vmem:[%s0 + $0x68] sm:$0xf]
  %v54 = vld [vmem:[%s0 + $0x6c] sm:$0xf]
  %v55 = vld [vmem:[%s0 + $0x70] sm:$0xf]
  %v56 = vld [vmem:[%s0 + $0x74] sm:$0xf]
  %v57 = vld [vmem:[%s0 + $0x78] sm:$0xf]
  %v58 = vld [vmem:[%s0 + $0x7c] sm:$0xf]
  %v59 = vld [vmem:[%s1] sm:$0xf]
  %v60 = vld [vmem:[%s1 + $0x4] sm:$0xf]
  %v61 = vld [vmem:[%s1 + $0x8] sm:$0xf]
  %v62 = vld [vmem:[%s1 + $0xc] sm:$0xf]
  %v63 = vld [vmem:[%s1 + $0x10] sm:$0xf]
  %v64 = vld [vmem:[%s1 + $0x14] sm:$0xf]
  %v65 = vld [vmem:[%s1 + $0x18] sm:$0xf]
  %v66 = vld [vmem:[%s1 + $0x1c] sm:$0xf]
  %v67 = vld [vmem:[%s2] sm:$0x1]
  %v69 = vlaneseq
  %v70 = vshrl.u32 %v69, 7
  %v71 = vsub.s32 0, %v70
  %v72 = vrot.slane %v67, %v71
  %v106 = vunpack.c.l.b16 %v27
  %v107 = vunpack.c.l.b16 %v28
  %v108 = vunpack.c.l.b16 %v29
  %v109 = vunpack.c.l.b16 %v30
  %v110 = vunpack.c.l.b16 %v31
  %v111 = vunpack.c.l.b16 %v32
  %v112 = vunpack.c.l.b16 %v33
  %v113 = vunpack.c.l.b16 %v34
  %v114 = vunpack.c.l.b16 %v35
  %v115 = vunpack.c.l.b16 %v36
  %v116 = vunpack.c.l.b16 %v37
  %v117 = vunpack.c.l.b16 %v38
  %v118 = vunpack.c.l.b16 %v39
  %v119 = vunpack.c.l.b16 %v40
  %v120 = vunpack.c.l.b16 %v41
  %v121 = vunpack.c.l.b16 %v42
  %v122 = vunpack.c.l.b16 %v43
  %v123 = vunpack.c.l.b16 %v44
  %v124 = vunpack.c.l.b16 %v45
  %v125 = vunpack.c.l.b16 %v46
  %v126 = vunpack.c.l.b16 %v47
  %v127 = vunpack.c.l.b16 %v48
  %v128 = vunpack.c.l.b16 %v49
  %v129 = vunpack.c.l.b16 %v50
  %v130 = vunpack.c.l.b16 %v51
  %v131 = vunpack.c.l.b16 %v52
  %v132 = vunpack.c.l.b16 %v53
  %v133 = vunpack.c.l.b16 %v54
  %v134 = vunpack.c.l.b16 %v55
  %v135 = vunpack.c.l.b16 %v56
  %v136 = vunpack.c.l.b16 %v57
  %v137 = vunpack.c.l.b16 %v58
  %v138 = vpack.c.b16 %v107, %v106
  %v139 = vpack.c.b16 %v109, %v108
  %v140 = vpack.c.b16 %v111, %v110
  %v141 = vpack.c.b16 %v113, %v112
  %v142 = vpack.c.b16 %v115, %v114
  %v143 = vpack.c.b16 %v117, %v116
  %v144 = vpack.c.b16 %v119, %v118
  %v145 = vpack.c.b16 %v121, %v120
  %v146 = vpack.c.b16 %v123, %v122
  %v147 = vpack.c.b16 %v125, %v124
  %v148 = vpack.c.b16 %v127, %v126
  %v149 = vpack.c.b16 %v129, %v128
  %v150 = vpack.c.b16 %v131, %v130
  %v151 = vpack.c.b16 %v133, %v132
  %v152 = vpack.c.b16 %v135, %v134
  %v153 = vpack.c.b16 %v137, %v136
  %v162 = vunpack.c.l.b16 %v59
  %v163 = vunpack.c.l.b16 %v60
  %v164 = vunpack.c.l.b16 %v61
  %v165 = vunpack.c.l.b16 %v62
  %v166 = vunpack.c.l.b16 %v63
  %v167 = vunpack.c.l.b16 %v64
  %v168 = vunpack.c.l.b16 %v65
  %v169 = vunpack.c.l.b16 %v66
  %v170 = vpack.c.b16 %v163, %v162
  %v171 = vpack.c.b16 %v165, %v164
  %v172 = vpack.c.b16 %v167, %v166
  %v173 = vpack.c.b16 %v169, %v168
  %vm178 = vcmask 523264
  %v180 = vsel %vm178, %v138, 0
  %v183 = vsel %vm178, %v139, 0
  %v186 = vsel %vm178, %v140, 0
  %v189 = vsel %vm178, %v141, 0
  %v192 = vsel %vm178, %v142, 0
  %v195 = vsel %vm178, %v143, 0
  %v198 = vsel %vm178, %v144, 0
  %v201 = vsel %vm178, %v145, 0
  %v204 = vsel %vm178, %v146, 0
  %v207 = vsel %vm178, %v147, 0
  %v210 = vsel %vm178, %v148, 0
  %v213 = vsel %vm178, %v149, 0
  %v216 = vsel %vm178, %v150, 0
  %v219 = vsel %vm178, %v151, 0
  %v222 = vsel %vm178, %v152, 0
  %v225 = vsel %vm178, %v153, 0
  %227 = vmatprep.subr.bf16.mxu0 0
  %228 = vmatpush1.bf16.msra.mxu0 %v170
  %229 = vmatprep.subr.bf16.mxu0 0
  %230 = vmatpush1.bf16.msra.mxu0 %v171
  %231 = vmatprep.subr.bf16.mxu0 0
  %232 = vmatpush1.bf16.msra.mxu0 %v172
  %233 = vmatprep.subr.bf16.mxu0 0
  %234 = vmatpush1.bf16.msra.mxu0 %v173
  %235 = vmatprep.subr.bf16.mxu0 0
  %236 = vmatpush1.bf16.msra.mxu0 0
  %237 = vmatprep.subr.bf16.mxu0 0
  %238 = vmatpush1.bf16.msra.mxu0 0
  %239 = vmatprep.subr.bf16.mxu0 0
  %240 = vmatpush1.bf16.msra.mxu0 0
  %241 = vmatprep.subr.bf16.mxu0 0
  %242 = vmatpush1.bf16.msra.mxu0 0
  %243 = vmatprep.subr.bf16.mxu0 0
  %244 = vmatpush1.bf16.msra.mxu0 0
  %245 = vmatprep.subr.bf16.mxu0 0
  %246 = vmatpush1.bf16.msra.mxu0 0
  %247 = vmatprep.subr.bf16.mxu0 0
  %248 = vmatpush1.bf16.msra.mxu0 0
  %249 = vmatprep.subr.bf16.mxu0 0
  %250 = vmatpush1.bf16.msra.mxu0 0
  %251 = vmatprep.subr.bf16.mxu0 0
  %252 = vmatpush1.bf16.msra.mxu0 0
  %253 = vmatprep.subr.bf16.mxu0 0
  %254 = vmatpush1.bf16.msra.mxu0 0
  %255 = vmatprep.subr.bf16.mxu0 0
  %256 = vmatpush1.bf16.msra.mxu0 0
  %257 = vmatprep.subr.bf16.mxu0 0
  %258 = vmatpush1.bf16.msra.mxu0 0
  %259 = vmatprep.mubr.bf16.mxu0 0
  %260 = vmatmul.mubr.bf16.gmra.mrb[0].mxu0 %v180
  %v261 = vpop.f32.mrb[0].mxu0
  %v262 = vadd.f32 %v72, %v261
  %v263 = vpop.f32.mrb[0].mxu0
  %v264 = vpop.f32.mrb[0].mxu0
  %v265 = vadd.f32 %v72, %v264
  %v266 = vpop.f32.mrb[0].mxu0
  %267 = vmatprep.mubr.bf16.mxu0 0
  %268 = vmatmul.mubr.bf16.gmra.mrb[0].mxu0 %v183
  %v269 = vpop.f32.mrb[0].mxu0
  %v270 = vadd.f32 %v72, %v269
  %v271 = vpop.f32.mrb[0].mxu0
  %v272 = vpop.f32.mrb[0].mxu0
  %v273 = vadd.f32 %v72, %v272
  %v274 = vpop.f32.mrb[0].mxu0
  %275 = vmatprep.mubr.bf16.mxu0 0
  %276 = vmatmul.mubr.bf16.gmra.mrb[0].mxu0 %v186
  %v277 = vpop.f32.mrb[0].mxu0
  %v278 = vadd.f32 %v72, %v277
  %v279 = vpop.f32.mrb[0].mxu0
  %v280 = vpop.f32.mrb[0].mxu0
  %v281 = vadd.f32 %v72, %v280
  %v282 = vpop.f32.mrb[0].mxu0
  %283 = vmatprep.mubr.bf16.mxu0 0
  %284 = vmatmul.mubr.bf16.gmra.mrb[0].mxu0 %v189
  %v285 = vpop.f32.mrb[0].mxu0
  %v286 = vadd.f32 %v72, %v285
  %v287 = vpop.f32.mrb[0].mxu0
  %v288 = vpop.f32.mrb[0].mxu0
  %v289 = vadd.f32 %v72, %v288
  %v290 = vpop.f32.mrb[0].mxu0
  %291 = vmatprep.mubr.bf16.mxu0 0
  %292 = vmatmul.mubr.bf16.gmra.mrb[0].mxu0 %v192
  %v293 = vpop.f32.mrb[0].mxu0
  %v294 = vadd.f32 %v72, %v293
  %v295 = vpop.f32.mrb[0].mxu0
  %v296 = vpop.f32.mrb[0].mxu0
  %v297 = vadd.f32 %v72, %v296
  %v298 = vpop.f32.mrb[0].mxu0
  %299 = vmatprep.mubr.bf16.mxu0 0
  %300 = vmatmul.mubr.bf16.gmra.mrb[0].mxu0 %v195
  %v301 = vpop.f32.mrb[0].mxu0
  %v302 = vadd.f32 %v72, %v301
  %v303 = vpop.f32.mrb[0].mxu0
  %v304 = vpop.f32.mrb[0].mxu0
  %v305 = vadd.f32 %v72, %v304
  %v306 = vpop.f32.mrb[0].mxu0
  %307 = vmatprep.mubr.bf16.mxu0 0
  %308 = vmatmul.mubr.bf16.gmra.mrb[0].mxu0 %v198
  %v309 = vpop.f32.mrb[0].mxu0
  %v310 = vadd.f32 %v72, %v309
  %v311 = vpop.f32.mrb[0].mxu0
  %v312 = vpop.f32.mrb[0].mxu0
  %v313 = vadd.f32 %v72, %v312
  %v314 = vpop.f32.mrb[0].mxu0
  %315 = vmatprep.mubr.bf16.mxu0 0
  %316 = vmatmul.mubr.bf16.gmra.mrb[0].mxu0 %v201
  %v317 = vpop.f32.mrb[0].mxu0
  %v318 = vadd.f32 %v72, %v317
  %v319 = vpop.f32.mrb[0].mxu0
  %v320 = vpop.f32.mrb[0].mxu0
  %v321 = vadd.f32 %v72, %v320
  %v322 = vpop.f32.mrb[0].mxu0
  %323 = vmatprep.mubr.bf16.mxu0 0
  %324 = vmatmul.mubr.bf16.gmra.mrb[0].mxu0 %v204
  %v325 = vpop.f32.mrb[0].mxu0
  %v326 = vadd.f32 %v72, %v325
  %v327 = vpop.f32.mrb[0].mxu0
  %v328 = vpop.f32.mrb[0].mxu0
  %v329 = vadd.f32 %v72, %v328
  %v330 = vpop.f32.mrb[0].mxu0
  %331 = vmatprep.mubr.bf16.mxu0 0
  %332 = vmatmul.mubr.bf16.gmra.mrb[0].mxu0 %v207
  %v333 = vpop.f32.mrb[0].mxu0
  %v334 = vadd.f32 %v72, %v333
  %v335 = vpop.f32.mrb[0].mxu0
  %v336 = vpop.f32.mrb[0].mxu0
  %v337 = vadd.f32 %v72, %v336
  %v338 = vpop.f32.mrb[0].mxu0
  %339 = vmatprep.mubr.bf16.mxu0 0
  %340 = vmatmul.mubr.bf16.gmra.mrb[0].mxu0 %v210
  %v341 = vpop.f32.mrb[0].mxu0
  %v342 = vadd.f32 %v72, %v341
  %v343 = vpop.f32.mrb[0].mxu0
  %v344 = vpop.f32.mrb[0].mxu0
  %v345 = vadd.f32 %v72, %v344
  %v346 = vpop.f32.mrb[0].mxu0
  %347 = vmatprep.mubr.bf16.mxu0 0
  %348 = vmatmul.mubr.bf16.gmra.mrb[0].mxu0 %v213
  %v349 = vpop.f32.mrb[0].mxu0
  %v350 = vadd.f32 %v72, %v349
  %v351 = vpop.f32.mrb[0].mxu0
  %v352 = vpop.f32.mrb[0].mxu0
  %v353 = vadd.f32 %v72, %v352
  %v354 = vpop.f32.mrb[0].mxu0
  %355 = vmatprep.mubr.bf16.mxu0 0
  %356 = vmatmul.mubr.bf16.gmra.mrb[0].mxu0 %v216
  %v357 = vpop.f32.mrb[0].mxu0
  %v358 = vadd.f32 %v72, %v357
  %v359 = vpop.f32.mrb[0].mxu0
  %v360 = vpop.f32.mrb[0].mxu0
  %v361 = vadd.f32 %v72, %v360
  %v362 = vpop.f32.mrb[0].mxu0
  %363 = vmatprep.mubr.bf16.mxu0 0
  %364 = vmatmul.mubr.bf16.gmra.mrb[0].mxu0 %v219
  %v365 = vpop.f32.mrb[0].mxu0
  %v366 = vadd.f32 %v72, %v365
  %v367 = vpop.f32.mrb[0].mxu0
  %v368 = vpop.f32.mrb[0].mxu0
  %v369 = vadd.f32 %v72, %v368
  %v370 = vpop.f32.mrb[0].mxu0
  %371 = vmatprep.mubr.bf16.mxu0 0
  %372 = vmatmul.mubr.bf16.gmra.mrb[0].mxu0 %v222
  %v373 = vpop.f32.mrb[0].mxu0
  %v374 = vadd.f32 %v72, %v373
  %v375 = vpop.f32.mrb[0].mxu0
  %v376 = vpop.f32.mrb[0].mxu0
  %v377 = vadd.f32 %v72, %v376
  %v378 = vpop.f32.mrb[0].mxu0
  %379 = vmatprep.mubr.bf16.mxu0 0
  %380 = vmatmul.mubr.bf16.gmra.mrb[0].mxu0 %v225
  %v381 = vpop.f32.mrb[0].mxu0
  %v382 = vadd.f32 %v72, %v381
  %v383 = vpop.f32.mrb[0].mxu0
  %v384 = vpop.f32.mrb[0].mxu0
  %v385 = vadd.f32 %v72, %v384
  %v386 = vpop.f32.mrb[0].mxu0
  %387 = vdwg.mxu0
  %v388 = vmax.f32 %v262, 0.0
  %v389 = vmax.f32 %v265, 0.0
  %v390 = vmax.f32 %v270, 0.0
  %v391 = vmax.f32 %v273, 0.0
  %v392 = vmax.f32 %v278, 0.0
  %v393 = vmax.f32 %v281, 0.0
  %v394 = vmax.f32 %v286, 0.0
  %v395 = vmax.f32 %v289, 0.0
  %v396 = vmax.f32 %v294, 0.0
  %v397 = vmax.f32 %v297, 0.0
  %v398 = vmax.f32 %v302, 0.0
  %v399 = vmax.f32 %v305, 0.0
  %v400 = vmax.f32 %v310, 0.0
  %v401 = vmax.f32 %v313, 0.0
  %v402 = vmax.f32 %v318, 0.0
  %v403 = vmax.f32 %v321, 0.0
  %v404 = vmax.f32 %v326, 0.0
  %v405 = vmax.f32 %v329, 0.0
  %v406 = vmax.f32 %v334, 0.0
  %v407 = vmax.f32 %v337, 0.0
  %v408 = vmax.f32 %v342, 0.0
  %v409 = vmax.f32 %v345, 0.0
  %v410 = vmax.f32 %v350, 0.0
  %v411 = vmax.f32 %v353, 0.0
  %v412 = vmax.f32 %v358, 0.0
  %v413 = vmax.f32 %v361, 0.0
  %v414 = vmax.f32 %v366, 0.0
  %v415 = vmax.f32 %v369, 0.0
  %v416 = vmax.f32 %v374, 0.0
  %v417 = vmax.f32 %v377, 0.0
  %v418 = vmax.f32 %v382, 0.0
  %v419 = vmax.f32 %v385, 0.0
  %v420 = vpack.c.bf16 %v389, %v388
  %v421 = vpack.c.bf16 %v391, %v390
  %v422 = vpack.c.bf16 %v393, %v392
  %v423 = vpack.c.bf16 %v395, %v394
  %v424 = vpack.c.bf16 %v397, %v396
  %v425 = vpack.c.bf16 %v399, %v398
  %v426 = vpack.c.bf16 %v401, %v400
  %v427 = vpack.c.bf16 %v403, %v402
  %v428 = vpack.c.bf16 %v405, %v404
  %v429 = vpack.c.bf16 %v407, %v406
  %v430 = vpack.c.bf16 %v409, %v408
  %v431 = vpack.c.bf16 %v411, %v410
  %v432 = vpack.c.bf16 %v413, %v412
  %v433 = vpack.c.bf16 %v415, %v414
  %v434 = vpack.c.bf16 %v417, %v416
  %v435 = vpack.c.bf16 %v419, %v418
  %v436 = vld [vmem:[%s3] sm:$0xf]
  %v437 = vld [vmem:[%s3 + $0x4] sm:$0xf]
  %v438 = vld [vmem:[%s3 + $0x8] sm:$0xf]
  %v439 = vld [vmem:[%s3 + $0xc] sm:$0xf]
  %v440 = vld [vmem:[%s3 + $0x10] sm:$0xf]
  %v441 = vld [vmem:[%s3 + $0x14] sm:$0xf]
  %v442 = vld [vmem:[%s3 + $0x18] sm:$0xf]
  %v443 = vld [vmem:[%s3 + $0x1c] sm:$0xf]
  %v444 = vld [vmem:[%s3 + $0x20] sm:$0xf]
  %v445 = vld [vmem:[%s3 + $0x24] sm:$0xf]
  %v446 = vld [vmem:[%s3 + $0x28] sm:$0xf]
  %v447 = vld [vmem:[%s3 + $0x2c] sm:$0xf]
  %v448 = vld [vmem:[%s3 + $0x30] sm:$0xf]
  %v449 = vld [vmem:[%s3 + $0x34] sm:$0xf]
  %v450 = vld [vmem:[%s3 + $0x38] sm:$0xf]
  %v451 = vld [vmem:[%s3 + $0x3c] sm:$0xf]
  %v452 = vld [vmem:[%s4] sm:$0x1]
  %v454 = vlaneseq
  %v455 = vshrl.u32 %v454, 7
  %v456 = vsub.s32 0, %v455
  %v457 = vrot.slane %v452, %v456
  %v475 = vunpack.c.l.b16 %v436
  %v476 = vunpack.c.l.b16 %v437
  %v477 = vunpack.c.l.b16 %v438
  %v478 = vunpack.c.l.b16 %v439
  %v479 = vunpack.c.l.b16 %v440
  %v480 = vunpack.c.l.b16 %v441
  %v481 = vunpack.c.l.b16 %v442
  %v482 = vunpack.c.l.b16 %v443
  %v483 = vunpack.c.l.b16 %v444
  %v484 = vunpack.c.l.b16 %v445
  %v485 = vunpack.c.l.b16 %v446
  %v486 = vunpack.c.l.b16 %v447
  %v487 = vunpack.c.l.b16 %v448
  %v488 = vunpack.c.l.b16 %v449
  %v489 = vunpack.c.l.b16 %v450
  %v490 = vunpack.c.l.b16 %v451
  %v491 = vpack.c.b16 %v476, %v475
  %v492 = vpack.c.b16 %v478, %v477
  %v493 = vpack.c.b16 %v480, %v479
  %v494 = vpack.c.b16 %v482, %v481
  %v495 = vpack.c.b16 %v484, %v483
  %v496 = vpack.c.b16 %v486, %v485
  %v497 = vpack.c.b16 %v488, %v487
  %v498 = vpack.c.b16 %v490, %v489
  %507 = vmatprep.subr.bf16.mxu0 0
  %508 = vmatpush1.bf16.msra.mxu0 %v491
  %509 = vmatprep.subr.bf16.mxu0 0
  %510 = vmatpush1.bf16.msra.mxu0 %v492
  %511 = vmatprep.subr.bf16.mxu0 0
  %512 = vmatpush1.bf16.msra.mxu0 %v493
  %513 = vmatprep.subr.bf16.mxu0 0
  %514 = vmatpush1.bf16.msra.mxu0 %v494
  %515 = vmatprep.subr.bf16.mxu0 0
  %516 = vmatpush1.bf16.msra.mxu0 %v495
  %517 = vmatprep.subr.bf16.mxu0 0
  %518 = vmatpush1.bf16.msra.mxu0 %v496
  %519 = vmatprep.subr.bf16.mxu0 0
  %520 = vmatpush1.bf16.msra.mxu0 %v497
  %521 = vmatprep.subr.bf16.mxu0 0
  %522 = vmatpush1.bf16.msra.mxu0 %v498
  %523 = vmatprep.subr.bf16.mxu0 0
  %524 = vmatpush1.bf16.msra.mxu0 0
  %525 = vmatprep.subr.bf16.mxu0 0
  %526 = vmatpush1.bf16.msra.mxu0 0
  %527 = vmatprep.subr.bf16.mxu0 0
  %528 = vmatpush1.bf16.msra.mxu0 0
  %529 = vmatprep.subr.bf16.mxu0 0
  %530 = vmatpush1.bf16.msra.mxu0 0
  %531 = vmatprep.subr.bf16.mxu0 0
  %532 = vmatpush1.bf16.msra.mxu0 0
  %533 = vmatprep.subr.bf16.mxu0 0
  %534 = vmatpush1.bf16.msra.mxu0 0
  %535 = vmatprep.subr.bf16.mxu0 0
  %536 = vmatpush1.bf16.msra.mxu0 0
  %537 = vmatprep.subr.bf16.mxu0 0
  %538 = vmatpush1.bf16.msra.mxu0 0
  %539 = vmatprep.mubr.bf16.mxu0 0
  %540 = vmatmul.mubr.bf16.gmra.mrb[0].mxu0 %v420
  %v541 = vpop.f32.mrb[0].mxu0
  %v542 = vadd.f32 %v457, %v541
  %v543 = vpop.f32.mrb[0].mxu0
  %v544 = vpop.f32.mrb[0].mxu0
  %v545 = vadd.f32 %v457, %v544
  %v546 = vpop.f32.mrb[0].mxu0
  %547 = vmatprep.mubr.bf16.mxu0 0
  %548 = vmatmul.mubr.bf16.gmra.mrb[0].mxu0 %v421
  %v549 = vpop.f32.mrb[0].mxu0
  %v550 = vadd.f32 %v457, %v549
  %v551 = vpop.f32.mrb[0].mxu0
  %v552 = vpop.f32.mrb[0].mxu0
  %v553 = vadd.f32 %v457, %v552
  %v554 = vpop.f32.mrb[0].mxu0
  %555 = vmatprep.mubr.bf16.mxu0 0
  %556 = vmatmul.mubr.bf16.gmra.mrb[0].mxu0 %v422
  %v557 = vpop.f32.mrb[0].mxu0
  %v558 = vadd.f32 %v457, %v557
  %v559 = vpop.f32.mrb[0].mxu0
  %v560 = vpop.f32.mrb[0].mxu0
  %v561 = vadd.f32 %v457, %v560
  %v562 = vpop.f32.mrb[0].mxu0
  %563 = vmatprep.mubr.bf16.mxu0 0
  %564 = vmatmul.mubr.bf16.gmra.mrb[0].mxu0 %v423
  %v565 = vpop.f32.mrb[0].mxu0
  %v566 = vadd.f32 %v457, %v565
  %v567 = vpop.f32.mrb[0].mxu0
  %v568 = vpop.f32.mrb[0].mxu0
  %v569 = vadd.f32 %v457, %v568
  %v570 = vpop.f32.mrb[0].mxu0
  %571 = vmatprep.mubr.bf16.mxu0 0
  %572 = vmatmul.mubr.bf16.gmra.mrb[0].mxu0 %v424
  %v573 = vpop.f32.mrb[0].mxu0
  %v574 = vadd.f32 %v457, %v573
  %v575 = vpop.f32.mrb[0].mxu0
  %v576 = vpop.f32.mrb[0].mxu0
  %v577 = vadd.f32 %v457, %v576
  %v578 = vpop.f32.mrb[0].mxu0
  %579 = vmatprep.mubr.bf16.mxu0 0
  %580 = vmatmul.mubr.bf16.gmra.mrb[0].mxu0 %v425
  %v581 = vpop.f32.mrb[0].mxu0
  %v582 = vadd.f32 %v457, %v581
  %v583 = vpop.f32.mrb[0].mxu0
  %v584 = vpop.f32.mrb[0].mxu0
  %v585 = vadd.f32 %v457, %v584
  %v586 = vpop.f32.mrb[0].mxu0
  %587 = vmatprep.mubr.bf16.mxu0 0
  %588 = vmatmul.mubr.bf16.gmra.mrb[0].mxu0 %v426
  %v589 = vpop.f32.mrb[0].mxu0
  %v590 = vadd.f32 %v457, %v589
  %v591 = vpop.f32.mrb[0].mxu0
  %v592 = vpop.f32.mrb[0].mxu0
  %v593 = vadd.f32 %v457, %v592
  %v594 = vpop.f32.mrb[0].mxu0
  %595 = vmatprep.mubr.bf16.mxu0 0
  %596 = vmatmul.mubr.bf16.gmra.mrb[0].mxu0 %v427
  %v597 = vpop.f32.mrb[0].mxu0
  %v598 = vadd.f32 %v457, %v597
  %v599 = vpop.f32.mrb[0].mxu0
  %v600 = vpop.f32.mrb[0].mxu0
  %v601 = vadd.f32 %v457, %v600
  %v602 = vpop.f32.mrb[0].mxu0
  %603 = vmatprep.mubr.bf16.mxu0 0
  %604 = vmatmul.mubr.bf16.gmra.mrb[0].mxu0 %v428
  %v605 = vpop.f32.mrb[0].mxu0
  %v606 = vadd.f32 %v457, %v605
  %v607 = vpop.f32.mrb[0].mxu0
  %v608 = vpop.f32.mrb[0].mxu0
  %v609 = vadd.f32 %v457, %v608
  %v610 = vpop.f32.mrb[0].mxu0
  %611 = vmatprep.mubr.bf16.mxu0 0
  %612 = vmatmul.mubr.bf16.gmra.mrb[0].mxu0 %v429
  %v613 = vpop.f32.mrb[0].mxu0
  %v614 = vadd.f32 %v457, %v613
  %v615 = vpop.f32.mrb[0].mxu0
  %v616 = vpop.f32.mrb[0].mxu0
  %v617 = vadd.f32 %v457, %v616
  %v618 = vpop.f32.mrb[0].mxu0
  %619 = vmatprep.mubr.bf16.mxu0 0
  %620 = vmatmul.mubr.bf16.gmra.mrb[0].mxu0 %v430
  %v621 = vpop.f32.mrb[0].mxu0
  %v622 = vadd.f32 %v457, %v621
  %v623 = vpop.f32.mrb[0].mxu0
  %v624 = vpop.f32.mrb[0].mxu0
  %v625 = vadd.f32 %v457, %v624
  %v626 = vpop.f32.mrb[0].mxu0
  %627 = vmatprep.mubr.bf16.mxu0 0
  %628 = vmatmul.mubr.bf16.gmra.mrb[0].mxu0 %v431
  %v629 = vpop.f32.mrb[0].mxu0
  %v630 = vadd.f32 %v457, %v629
  %v631 = vpop.f32.mrb[0].mxu0
  %v632 = vpop.f32.mrb[0].mxu0
  %v633 = vadd.f32 %v457, %v632
  %v634 = vpop.f32.mrb[0].mxu0
  %635 = vmatprep.mubr.bf16.mxu0 0
  %636 = vmatmul.mubr.bf16.gmra.mrb[0].mxu0 %v432
  %v637 = vpop.f32.mrb[0].mxu0
  %v638 = vadd.f32 %v457, %v637
  %v639 = vpop.f32.mrb[0].mxu0
  %v640 = vpop.f32.mrb[0].mxu0
  %v641 = vadd.f32 %v457, %v640
  %v642 = vpop.f32.mrb[0].mxu0
  %643 = vmatprep.mubr.bf16.mxu0 0
  %644 = vmatmul.mubr.bf16.gmra.mrb[0].mxu0 %v433
  %v645 = vpop.f32.mrb[0].mxu0
  %v646 = vadd.f32 %v457, %v645
  %v647 = vpop.f32.mrb[0].mxu0
  %v648 = vpop.f32.mrb[0].mxu0
  %v649 = vadd.f32 %v457, %v648
  %v650 = vpop.f32.mrb[0].mxu0
  %651 = vmatprep.mubr.bf16.mxu0 0
  %652 = vmatmul.mubr.bf16.gmra.mrb[0].mxu0 %v434
  %v653 = vpop.f32.mrb[0].mxu0
  %v654 = vadd.f32 %v457, %v653
  %v655 = vpop.f32.mrb[0].mxu0
  %v656 = vpop.f32.mrb[0].mxu0
  %v657 = vadd.f32 %v457, %v656
  %v658 = vpop.f32.mrb[0].mxu0
  %659 = vmatprep.mubr.bf16.mxu0 0
  %660 = vmatmul.mubr.bf16.gmra.mrb[0].mxu0 %v435
  %v661 = vpop.f32.mrb[0].mxu0
  %v662 = vadd.f32 %v457, %v661
  %v663 = vpop.f32.mrb[0].mxu0
  %v664 = vpop.f32.mrb[0].mxu0
  %v665 = vadd.f32 %v457, %v664
  %v666 = vpop.f32.mrb[0].mxu0
  %667 = vdwg.mxu0
  %v668 = vmax.f32 %v542, 0.0
  %v669 = vmax.f32 %v545, 0.0
  %v670 = vmax.f32 %v550, 0.0
  %v671 = vmax.f32 %v553, 0.0
  %v672 = vmax.f32 %v558, 0.0
  %v673 = vmax.f32 %v561, 0.0
  %v674 = vmax.f32 %v566, 0.0
  %v675 = vmax.f32 %v569, 0.0
  %v676 = vmax.f32 %v574, 0.0
  %v677 = vmax.f32 %v577, 0.0
  %v678 = vmax.f32 %v582, 0.0
  %v679 = vmax.f32 %v585, 0.0
  %v680 = vmax.f32 %v590, 0.0
  %v681 = vmax.f32 %v593, 0.0
  %v682 = vmax.f32 %v598, 0.0
  %v683 = vmax.f32 %v601, 0.0
  %v684 = vmax.f32 %v606, 0.0
  %v685 = vmax.f32 %v609, 0.0
  %v686 = vmax.f32 %v614, 0.0
  %v687 = vmax.f32 %v617, 0.0
  %v688 = vmax.f32 %v622, 0.0
  %v689 = vmax.f32 %v625, 0.0
  %v690 = vmax.f32 %v630, 0.0
  %v691 = vmax.f32 %v633, 0.0
  %v692 = vmax.f32 %v638, 0.0
  %v693 = vmax.f32 %v641, 0.0
  %v694 = vmax.f32 %v646, 0.0
  %v695 = vmax.f32 %v649, 0.0
  %v696 = vmax.f32 %v654, 0.0
  %v697 = vmax.f32 %v657, 0.0
  %v698 = vmax.f32 %v662, 0.0
  %v699 = vmax.f32 %v665, 0.0
  %v700 = vpack.c.bf16 %v669, %v668
  %v701 = vpack.c.bf16 %v671, %v670
  %v702 = vpack.c.bf16 %v673, %v672
  %v703 = vpack.c.bf16 %v675, %v674
  %v704 = vpack.c.bf16 %v677, %v676
  %v705 = vpack.c.bf16 %v679, %v678
  %v706 = vpack.c.bf16 %v681, %v680
  %v707 = vpack.c.bf16 %v683, %v682
  %v708 = vpack.c.bf16 %v685, %v684
  %v709 = vpack.c.bf16 %v687, %v686
  %v710 = vpack.c.bf16 %v689, %v688
  %v711 = vpack.c.bf16 %v691, %v690
  %v712 = vpack.c.bf16 %v693, %v692
  %v713 = vpack.c.bf16 %v695, %v694
  %v714 = vpack.c.bf16 %v697, %v696
  %v715 = vpack.c.bf16 %v699, %v698
  %v716 = vld [vmem:[%s5] sm:$0xf]
  %v717 = vld [vmem:[%s5 + $0x4] sm:$0xf]
  %v718 = vld [vmem:[%s5 + $0x8] sm:$0xf]
  %v719 = vld [vmem:[%s5 + $0xc] sm:$0xf]
  %v720 = vld [vmem:[%s5 + $0x10] sm:$0xf]
  %v721 = vld [vmem:[%s5 + $0x14] sm:$0xf]
  %v722 = vld [vmem:[%s5 + $0x18] sm:$0xf]
  %v723 = vld [vmem:[%s5 + $0x1c] sm:$0xf]
  %v724 = vld [vmem:[%s5 + $0x20] sm:$0xf]
  %v725 = vld [vmem:[%s5 + $0x24] sm:$0xf]
  %v726 = vld [vmem:[%s5 + $0x28] sm:$0xf]
  %v727 = vld [vmem:[%s5 + $0x2c] sm:$0xf]
  %v728 = vld [vmem:[%s5 + $0x30] sm:$0xf]
  %v729 = vld [vmem:[%s5 + $0x34] sm:$0xf]
  %v730 = vld [vmem:[%s5 + $0x38] sm:$0xf]
  %v731 = vld [vmem:[%s5 + $0x3c] sm:$0xf]
  %v732 = vld [vmem:[%s6] sm:$0x1]
  %v734 = vlaneseq
  %v735 = vshrl.u32 %v734, 7
  %v736 = vsub.s32 0, %v735
  %v737 = vrot.slane %v732, %v736
  %v755 = vunpack.c.l.b16 %v716
  %v756 = vunpack.c.l.b16 %v717
  %v757 = vunpack.c.l.b16 %v718
  %v758 = vunpack.c.l.b16 %v719
  %v759 = vunpack.c.l.b16 %v720
  %v760 = vunpack.c.l.b16 %v721
  %v761 = vunpack.c.l.b16 %v722
  %v762 = vunpack.c.l.b16 %v723
  %v763 = vunpack.c.l.b16 %v724
  %v764 = vunpack.c.l.b16 %v725
  %v765 = vunpack.c.l.b16 %v726
  %v766 = vunpack.c.l.b16 %v727
  %v767 = vunpack.c.l.b16 %v728
  %v768 = vunpack.c.l.b16 %v729
  %v769 = vunpack.c.l.b16 %v730
  %v770 = vunpack.c.l.b16 %v731
  %v771 = vpack.c.b16 %v756, %v755
  %v772 = vpack.c.b16 %v758, %v757
  %v773 = vpack.c.b16 %v760, %v759
  %v774 = vpack.c.b16 %v762, %v761
  %v775 = vpack.c.b16 %v764, %v763
  %v776 = vpack.c.b16 %v766, %v765
  %v777 = vpack.c.b16 %v768, %v767
  %v778 = vpack.c.b16 %v770, %v769
  %787 = vmatprep.subr.bf16.mxu0 0
  %788 = vmatpush1.bf16.msra.mxu0 %v771
  %789 = vmatprep.subr.bf16.mxu0 0
  %790 = vmatpush1.bf16.msra.mxu0 %v772
  %791 = vmatprep.subr.bf16.mxu0 0
  %792 = vmatpush1.bf16.msra.mxu0 %v773
  %793 = vmatprep.subr.bf16.mxu0 0
  %794 = vmatpush1.bf16.msra.mxu0 %v774
  %795 = vmatprep.subr.bf16.mxu0 0
  %796 = vmatpush1.bf16.msra.mxu0 %v775
  %797 = vmatprep.subr.bf16.mxu0 0
  %798 = vmatpush1.bf16.msra.mxu0 %v776
  %799 = vmatprep.subr.bf16.mxu0 0
  %800 = vmatpush1.bf16.msra.mxu0 %v777
  %801 = vmatprep.subr.bf16.mxu0 0
  %802 = vmatpush1.bf16.msra.mxu0 %v778
  %803 = vmatprep.subr.bf16.mxu0 0
  %804 = vmatpush1.bf16.msra.mxu0 0
  %805 = vmatprep.subr.bf16.mxu0 0
  %806 = vmatpush1.bf16.msra.mxu0 0
  %807 = vmatprep.subr.bf16.mxu0 0
  %808 = vmatpush1.bf16.msra.mxu0 0
  %809 = vmatprep.subr.bf16.mxu0 0
  %810 = vmatpush1.bf16.msra.mxu0 0
  %811 = vmatprep.subr.bf16.mxu0 0
  %812 = vmatpush1.bf16.msra.mxu0 0
  %813 = vmatprep.subr.bf16.mxu0 0
  %814 = vmatpush1.bf16.msra.mxu0 0
  %815 = vmatprep.subr.bf16.mxu0 0
  %816 = vmatpush1.bf16.msra.mxu0 0
  %817 = vmatprep.subr.bf16.mxu0 0
  %818 = vmatpush1.bf16.msra.mxu0 0
  %819 = vmatprep.mubr.bf16.mxu0 0
  %820 = vmatmul.mubr.bf16.gmra.mrb[0].mxu0 %v700
  %v821 = vpop.f32.mrb[0].mxu0
  %v822 = vadd.f32 %v737, %v821
  %v823 = vpop.f32.mrb[0].mxu0
  %v824 = vpop.f32.mrb[0].mxu0
  %v825 = vadd.f32 %v737, %v824
  %v826 = vpop.f32.mrb[0].mxu0
  %827 = vmatprep.mubr.bf16.mxu0 0
  %828 = vmatmul.mubr.bf16.gmra.mrb[0].mxu0 %v701
  %v829 = vpop.f32.mrb[0].mxu0
  %v830 = vadd.f32 %v737, %v829
  %v831 = vpop.f32.mrb[0].mxu0
  %v832 = vpop.f32.mrb[0].mxu0
  %v833 = vadd.f32 %v737, %v832
  %v834 = vpop.f32.mrb[0].mxu0
  %835 = vmatprep.mubr.bf16.mxu0 0
  %836 = vmatmul.mubr.bf16.gmra.mrb[0].mxu0 %v702
  %v837 = vpop.f32.mrb[0].mxu0
  %v838 = vadd.f32 %v737, %v837
  %v839 = vpop.f32.mrb[0].mxu0
  %v840 = vpop.f32.mrb[0].mxu0
  %v841 = vadd.f32 %v737, %v840
  %v842 = vpop.f32.mrb[0].mxu0
  %843 = vmatprep.mubr.bf16.mxu0 0
  %844 = vmatmul.mubr.bf16.gmra.mrb[0].mxu0 %v703
  %v845 = vpop.f32.mrb[0].mxu0
  %v846 = vadd.f32 %v737, %v845
  %v847 = vpop.f32.mrb[0].mxu0
  %v848 = vpop.f32.mrb[0].mxu0
  %v849 = vadd.f32 %v737, %v848
  %v850 = vpop.f32.mrb[0].mxu0
  %851 = vmatprep.mubr.bf16.mxu0 0
  %852 = vmatmul.mubr.bf16.gmra.mrb[0].mxu0 %v704
  %v853 = vpop.f32.mrb[0].mxu0
  %v854 = vadd.f32 %v737, %v853
  %v855 = vpop.f32.mrb[0].mxu0
  %v856 = vpop.f32.mrb[0].mxu0
  %v857 = vadd.f32 %v737, %v856
  %v858 = vpop.f32.mrb[0].mxu0
  %859 = vmatprep.mubr.bf16.mxu0 0
  %860 = vmatmul.mubr.bf16.gmra.mrb[0].mxu0 %v705
  %v861 = vpop.f32.mrb[0].mxu0
  %v862 = vadd.f32 %v737, %v861
  %v863 = vpop.f32.mrb[0].mxu0
  %v864 = vpop.f32.mrb[0].mxu0
  %v865 = vadd.f32 %v737, %v864
  %v866 = vpop.f32.mrb[0].mxu0
  %867 = vmatprep.mubr.bf16.mxu0 0
  %868 = vmatmul.mubr.bf16.gmra.mrb[0].mxu0 %v706
  %v869 = vpop.f32.mrb[0].mxu0
  %v870 = vadd.f32 %v737, %v869
  %v871 = vpop.f32.mrb[0].mxu0
  %v872 = vpop.f32.mrb[0].mxu0
  %v873 = vadd.f32 %v737, %v872
  %v874 = vpop.f32.mrb[0].mxu0
  %875 = vmatprep.mubr.bf16.mxu0 0
  %876 = vmatmul.mubr.bf16.gmra.mrb[0].mxu0 %v707
  %v877 = vpop.f32.mrb[0].mxu0
  %v878 = vadd.f32 %v737, %v877
  %v879 = vpop.f32.mrb[0].mxu0
  %v880 = vpop.f32.mrb[0].mxu0
  %v881 = vadd.f32 %v737, %v880
  %v882 = vpop.f32.mrb[0].mxu0
  %883 = vmatprep.mubr.bf16.mxu0 0
  %884 = vmatmul.mubr.bf16.gmra.mrb[0].mxu0 %v708
  %v885 = vpop.f32.mrb[0].mxu0
  %v886 = vadd.f32 %v737, %v885
  %v887 = vpop.f32.mrb[0].mxu0
  %v888 = vpop.f32.mrb[0].mxu0
  %v889 = vadd.f32 %v737, %v888
  %v890 = vpop.f32.mrb[0].mxu0
  %891 = vmatprep.mubr.bf16.mxu0 0
  %892 = vmatmul.mubr.bf16.gmra.mrb[0].mxu0 %v709
  %v893 = vpop.f32.mrb[0].mxu0
  %v894 = vadd.f32 %v737, %v893
  %v895 = vpop.f32.mrb[0].mxu0
  %v896 = vpop.f32.mrb[0].mxu0
  %v897 = vadd.f32 %v737, %v896
  %v898 = vpop.f32.mrb[0].mxu0
  %899 = vmatprep.mubr.bf16.mxu0 0
  %900 = vmatmul.mubr.bf16.gmra.mrb[0].mxu0 %v710
  %v901 = vpop.f32.mrb[0].mxu0
  %v902 = vadd.f32 %v737, %v901
  %v903 = vpop.f32.mrb[0].mxu0
  %v904 = vpop.f32.mrb[0].mxu0
  %v905 = vadd.f32 %v737, %v904
  %v906 = vpop.f32.mrb[0].mxu0
  %907 = vmatprep.mubr.bf16.mxu0 0
  %908 = vmatmul.mubr.bf16.gmra.mrb[0].mxu0 %v711
  %v909 = vpop.f32.mrb[0].mxu0
  %v910 = vadd.f32 %v737, %v909
  %v911 = vpop.f32.mrb[0].mxu0
  %v912 = vpop.f32.mrb[0].mxu0
  %v913 = vadd.f32 %v737, %v912
  %v914 = vpop.f32.mrb[0].mxu0
  %915 = vmatprep.mubr.bf16.mxu0 0
  %916 = vmatmul.mubr.bf16.gmra.mrb[0].mxu0 %v712
  %v917 = vpop.f32.mrb[0].mxu0
  %v918 = vadd.f32 %v737, %v917
  %v919 = vpop.f32.mrb[0].mxu0
  %v920 = vpop.f32.mrb[0].mxu0
  %v921 = vadd.f32 %v737, %v920
  %v922 = vpop.f32.mrb[0].mxu0
  %923 = vmatprep.mubr.bf16.mxu0 0
  %924 = vmatmul.mubr.bf16.gmra.mrb[0].mxu0 %v713
  %v925 = vpop.f32.mrb[0].mxu0
  %v926 = vadd.f32 %v737, %v925
  %v927 = vpop.f32.mrb[0].mxu0
  %v928 = vpop.f32.mrb[0].mxu0
  %v929 = vadd.f32 %v737, %v928
  %v930 = vpop.f32.mrb[0].mxu0
  %931 = vmatprep.mubr.bf16.mxu0 0
  %932 = vmatmul.mubr.bf16.gmra.mrb[0].mxu0 %v714
  %v933 = vpop.f32.mrb[0].mxu0
  %v934 = vadd.f32 %v737, %v933
  %v935 = vpop.f32.mrb[0].mxu0
  %v936 = vpop.f32.mrb[0].mxu0
  %v937 = vadd.f32 %v737, %v936
  %v938 = vpop.f32.mrb[0].mxu0
  %939 = vmatprep.mubr.bf16.mxu0 0
  %940 = vmatmul.mubr.bf16.gmra.mrb[0].mxu0 %v715
  %v941 = vpop.f32.mrb[0].mxu0
  %v942 = vadd.f32 %v737, %v941
  %v943 = vpop.f32.mrb[0].mxu0
  %v944 = vpop.f32.mrb[0].mxu0
  %v945 = vadd.f32 %v737, %v944
  %v946 = vpop.f32.mrb[0].mxu0
  %947 = vdwg.mxu0
  %948 = vst [vmem:[%s7] sm:$0xff] %v822
  %949 = vst [vmem:[%s7 + $0x8] sm:$0xff] %v825
  %950 = vst [vmem:[%s7 + $0x10] sm:$0xff] %v830
  %951 = vst [vmem:[%s7 + $0x18] sm:$0xff] %v833
  %952 = vst [vmem:[%s7 + $0x20] sm:$0xff] %v838
  %953 = vst [vmem:[%s7 + $0x28] sm:$0xff] %v841
  %954 = vst [vmem:[%s7 + $0x30] sm:$0xff] %v846
  %955 = vst [vmem:[%s7 + $0x38] sm:$0xff] %v849
  %956 = vst [vmem:[%s7 + $0x40] sm:$0xff] %v854
  %957 = vst [vmem:[%s7 + $0x48] sm:$0xff] %v857
  %958 = vst [vmem:[%s7 + $0x50] sm:$0xff] %v862
  %959 = vst [vmem:[%s7 + $0x58] sm:$0xff] %v865
  %960 = vst [vmem:[%s7 + $0x60] sm:$0xff] %v870
  %961 = vst [vmem:[%s7 + $0x68] sm:$0xff] %v873
  %962 = vst [vmem:[%s7 + $0x70] sm:$0xff] %v878
  %963 = vst [vmem:[%s7 + $0x78] sm:$0xff] %v881
  %964 = vst [vmem:[%s7 + $0x80] sm:$0xff] %v886
  %965 = vst [vmem:[%s7 + $0x88] sm:$0xff] %v889
  %966 = vst [vmem:[%s7 + $0x90] sm:$0xff] %v894
  %967 = vst [vmem:[%s7 + $0x98] sm:$0xff] %v897
  %968 = vst [vmem:[%s7 + $0xa0] sm:$0xff] %v902
  %969 = vst [vmem:[%s7 + $0xa8] sm:$0xff] %v905
  %970 = vst [vmem:[%s7 + $0xb0] sm:$0xff] %v910
  %971 = vst [vmem:[%s7 + $0xb8] sm:$0xff] %v913
  %972 = vst [vmem:[%s7 + $0xc0] sm:$0xff] %v918
  %973 = vst [vmem:[%s7 + $0xc8] sm:$0xff] %v921
  %974 = vst [vmem:[%s7 + $0xd0] sm:$0xff] %v926
  %975 = vst [vmem:[%s7 + $0xd8] sm:$0xff] %v929
  %976 = vst [vmem:[%s7 + $0xe0] sm:$0xff] %v934
  %977 = vst [vmem:[%s7 + $0xe8] sm:$0xff] %v937
  %978 = vst [vmem:[%s7 + $0xf0] sm:$0xff] %v942
  %979 = vst [vmem:[%s7 + $0xf8] sm:$0xff] %v945
  // Predicated region
  $region30: #{neural_net_forward.1} parent=0 // pred_check
    _
  $region31: #{neural_net_forward.1} parent=0 // pred_check_branch
    %981 = sbr.rel (0) target = $region33
  $region32: #{neural_net_forward.1} parent=0 // pred_region
    _
  $region33: #{neural_net_forward.1} parent=0 // pred_fallthru
    _
  // Predicated region
  $region34: #{neural_net_forward.1} parent=0 // pred_check
    _
  $region35: #{neural_net_forward.1} parent=0 // pred_check_branch
    %983 = sbr.rel (0) target = $region37
  $region36: #{neural_net_forward.1} parent=0 // pred_region
    _
  $region37: #{neural_net_forward.1} parent=0 // pred_fallthru
    _

</llo_original>
